<compile_context>
chip_gen: v5e
topology: v5e:2x2
jax: 0.10.0
libtpu: 0.0.40
codegen_flags: <defaults>
</compile_context>

<pallas_src>
import functools

import jax
import jax.numpy as jnp
from jax import lax
from jax.experimental import pallas as pl
from jax.experimental.pallas import tpu as pltpu


def _round_up(x, m):
    return ((x + m - 1) // m) * m


def _vmem_limit_bytes():
    """~3/4 of physical VMEM (48 MiB on v7x, ~96 MiB on v5e/v6e), with fallback."""
    try:
        cap = getattr(pltpu.get_tpu_info(), "vmem_capacity_bytes", None)
        if cap:
            return int(min(cap * 3 // 4, 110 * 1024 * 1024))
    except Exception:
        pass
    return 48 * 1024 * 1024


def _pick_cout_tile(cout, w_rows, budget_bytes):
    """Largest multiple of 128 dividing `cout` whose bf16 weight slab fits budget."""
    best = min(cout, 128)
    d = 128
    while d <= cout:
        if cout % d == 0 and w_rows * d * 2 <= budget_bytes:
            best = d
        d += 128
    return best


def _compiler_params(vmem_limit):
    return pltpu.CompilerParams(
        dimension_semantics=("parallel", "parallel"),
        vmem_limit_bytes=vmem_limit)


def _conv1d_tile_kernel(xl_ref, xc_ref, xr_ref, w_ref, b_ref, o_ref, xwin_ref,
                        *, K, G, TL, HALO, CHUNK, pad_l, L, apply_relu):
    """One (batch, L-tile) step of a 'same'-padded Conv1d with fused bias/ReLU.

    xl_ref  : (HALO, Cin) bf16   strip left of the tile (garbage when t == 0)
    xc_ref  : (TL,   Cin) bf16   centre tile
    xr_ref  : (HALO, Cin) bf16   strip right of the tile (garbage when t == last)
    w_ref   : (K*Cin, Cout) bf16 flattened weights (row = k*Cin + c), VMEM-resident
    b_ref   : (1, Cout)     f32  bias, VMEM-resident
    o_ref   : (TL, Cout)         output tile (bf16, or f32 for the last layer)
    xwin_ref: (2*HALO + TL, Cin) bf16 scratch (assembled haloed input window)
    """
    t = pl.program_id(1)
    n_t = pl.num_programs(1)
    cin = xc_ref.shape[1]

    # ---- assemble the haloed input window in VMEM --------------------------
    # TODO(synk): the (TL, Cin) centre copy is pure layout traffic; reading
    # non-boundary taps straight from xc_ref would remove it (second-tier).
    xwin_ref[pl.ds(HALO, TL), :] = xc_ref[...]

    @pl.when(t > 0)
    def _():
        xwin_ref[pl.ds(0, HALO), :] = xl_ref[...]

    @pl.when(t == 0)
    def _():
        xwin_ref[pl.ds(0, HALO), :] = jnp.zeros((HALO, cin), xwin_ref.dtype)

    @pl.when(t < n_t - 1)
    def _():
        xwin_ref[pl.ds(HALO + TL, HALO), :] = xr_ref[...]

    @pl.when(t == n_t - 1)
    def _():
        xwin_ref[pl.ds(HALO + TL, HALO), :] = jnp.zeros((HALO, cin), xwin_ref.dtype)

    # ---- grouped-tap MXU matmuls, per-chunk f32 accumulation in vregs -------
    # TODO(synk): on v7x, explicit MXU driving (matmul_acc_lhs into one MRB
    # address across all taps) would remove the per-group f32 adds entirely.
    bias = b_ref[...].astype(jnp.float32)             # (1, Cout)
    off = HALO - pad_l
    for r0 in range(0, TL, CHUNK):
        cs = min(CHUNK, TL - r0)
        acc = None
        for g0 in range(0, K, G):
            gs = min(G, K - g0)
            base = off + g0 + r0
            if gs == 1:
                op = xwin_ref[pl.ds(base, cs), :]
            else:
                op = jnp.concatenate(
                    [xwin_ref[pl.ds(base + j, cs), :] for j in range(gs)],
                    axis=-1)
            part = jnp.dot(op, w_ref[pl.ds(g0 * cin, gs * cin), :],
                           preferred_element_type=jnp.float32)
            acc = part if acc is None else acc + part
        acc = acc + bias
        if apply_relu:
            acc = jnp.maximum(acc, 0.0)
        # Rows at global position >= L are padding; keep them exact zeros so the
        # next layer sees correct 'same' zero padding at the right edge.
        rows = t * TL + r0 + lax.broadcasted_iota(jnp.int32, (cs, 1), 0)
        acc = jnp.where(rows < L, acc, 0.0)
        o_ref[pl.ds(r0, cs), :] = acc.astype(o_ref.dtype)


def _pointwise_kernel(x_ref, w_ref, b_ref, o_ref, *, CHUNK, L, apply_relu):
    """y = act(x @ w + b) per row, rows >= L zeroed.  Used for im2col'd layer 0.

    x_ref: (TL, Cin) bf16; w_ref: (Cin, Cout) bf16 VMEM-resident;
    b_ref: (1, Cout) f32;  o_ref: (TL, Cout).
    """
    t = pl.program_id(1)
    TL = x_ref.shape[0]
    bias = b_ref[...].astype(jnp.float32)
    for r0 in range(0, TL, CHUNK):
        cs = min(CHUNK, TL - r0)
        acc = jnp.dot(x_ref[pl.ds(r0, cs), :], w_ref[...],
                      preferred_element_type=jnp.float32) + bias
        if apply_relu:
            acc = jnp.maximum(acc, 0.0)
        rows = t * TL + r0 + lax.broadcasted_iota(jnp.int32, (cs, 1), 0)
        acc = jnp.where(rows < L, acc, 0.0)
        o_ref[pl.ds(r0, cs), :] = acc.astype(o_ref.dtype)


def pointwise_pallas(x_blc, w, bias_2d, *, L, TL, apply_relu, out_dtype, vmem_limit):
    """Per-position matmul over the im2col'd layer-0 patches."""
    B, Lt, Cin = x_blc.shape
    Cin_w, Cout = w.shape
    assert Cin_w == Cin and Lt % TL == 0 and Cin % 128 == 0 and Cout % 128 == 0
    n_t = Lt // TL
    CHUNK = 256 if Cout <= 128 else 128
    kern = functools.partial(_pointwise_kernel, CHUNK=CHUNK, L=L,
                             apply_relu=apply_relu)
    return pl.pallas_call(
        kern,
        out_shape=jax.ShapeDtypeStruct((B, Lt, Cout), out_dtype),
        grid=(B, n_t),
        in_specs=[
            pl.BlockSpec((None, TL, Cin), lambda b, t: (b, t, 0)),
            pl.BlockSpec(memory_space=pltpu.MemorySpace.VMEM),
            pl.BlockSpec(memory_space=pltpu.MemorySpace.VMEM),
        ],
        out_specs=pl.BlockSpec((None, TL, Cout), lambda b, t: (b, t, 0)),
        compiler_params=_compiler_params(vmem_limit),
    )(x_blc, w, bias_2d)


def conv1d_same_pallas(x_blc, w_flat, bias_2d, *, K, L, TL, HALO, apply_relu,
                       out_dtype, vmem_limit):
    """Conv1d padding='same', stride=1 (PyTorch cross-correlation semantics).

    x_blc   : (B, Lt, Cin) bf16, Lt a multiple of TL, rows >= L are zero.
    w_flat  : (K*Cin, Cout) bf16, row index k*Cin + c.
    bias_2d : (1, Cout) f32.
    returns : (B, Lt, Cout) out_dtype, rows >= L are zero.
    """
    B, Lt, Cin = x_blc.shape
    KC, Cout = w_flat.shape
    assert KC == K * Cin and Cin % 128 == 0 and Cout % 128 == 0
    assert Lt % TL == 0 and TL % HALO == 0 and HALO % 16 == 0 and HALO >= K - 1
    pad_l = (K - 1) // 2

    # v7x weight-residency budget: split Cout when the resident weight slab
    # would eat too much of the (generation-dependent) VMEM limit.
    co_tile = _pick_cout_tile(Cout, KC, vmem_limit // 2)
    if co_tile < Cout:
        parts = [
            conv1d_same_pallas(x_blc, w_flat[:, j:j + co_tile],
                               bias_2d[:, j:j + co_tile], K=K, L=L, TL=TL,
                               HALO=HALO, apply_relu=apply_relu,
                               out_dtype=out_dtype, vmem_limit=vmem_limit)
            for j in range(0, Cout, co_tile)]
        return jnp.concatenate(parts, axis=-1)

    n_t = Lt // TL
    S = TL // HALO            # HALO-sized sub-blocks per L-tile
    nH = Lt // HALO           # total number of HALO-sized blocks
    CHUNK = 256 if Cout <= 128 else 128
    G = min(K, max(1, 256 // Cin))   # taps folded per MXU matmul (full contraction)

    kern = functools.partial(
        _conv1d_tile_kernel, K=K, G=G, TL=TL, HALO=HALO, CHUNK=CHUNK,
        pad_l=pad_l, L=L, apply_relu=apply_relu)

    return pl.pallas_call(
        kern,
        out_shape=jax.ShapeDtypeStruct((B, Lt, Cout), out_dtype),
        grid=(B, n_t),
        in_specs=[
            # Strip just left of the tile (block index clamped at the edge;
            # zero-masked in-kernel when t == 0).
            pl.BlockSpec((None, HALO, Cin),
                         lambda b, t: (b, jnp.maximum(t * S - 1, 0), 0)),
            # Centre tile.
            pl.BlockSpec((None, TL, Cin), lambda b, t: (b, t, 0)),
            # Strip just right of the tile (clamped; zero-masked when t == last).
            pl.BlockSpec((None, HALO, Cin),
                         lambda b, t: (b, jnp.minimum((t + 1) * S, nH - 1), 0)),
            # Loop-invariant weights / bias: whole array resident in VMEM
            # (single-buffered; no per-step weight DMA).
            pl.BlockSpec(memory_space=pltpu.MemorySpace.VMEM),
            pl.BlockSpec(memory_space=pltpu.MemorySpace.VMEM),
        ],
        out_specs=pl.BlockSpec((None, TL, Cout), lambda b, t: (b, t, 0)),
        scratch_shapes=[pltpu.VMEM((2 * HALO + TL, Cin), jnp.bfloat16)],
        compiler_params=_compiler_params(vmem_limit),
    )(x_blc, x_blc, x_blc, w_flat, bias_2d)


class ECGEmbeddingsPallas:
    """JAX/Pallas port of ECGEmbeddings_old (forward only)."""

    def __init__(self, d_input, d_model, n_conv_layers=8, window_size=51,
                 key=None, tl_target=512):
        if key is None:
            key = jax.random.PRNGKey(0)
        self.d_input = d_input
        self.d_model = d_model
        self.window_size = window_size
        self.tl_target = tl_target
        K = window_size
        self.cpad = _round_up(d_model, 128)          # lane-dense channel width
        # Layer-0 path: im2col (lane-dense, near-full-width single matmul) when
        # K*d_input is modest; otherwise fall back to the generic conv kernel.
        self.layer0_im2col = K * d_input <= 1024
        self.cin0_pad = (_round_up(K * d_input, 128) if self.layer0_im2col
                         else _round_up(d_input, 128))

        self.params = []    # f32, PyTorch layout (Cout, Cin, K) -- for reference
        self.kparams = []   # bf16 (K*Cin_pad, Cout_pad) + f32 (1, Cout_pad)
        for i in range(n_conv_layers):
            cin = d_input if i == 0 else d_model
            key, wk, bk = jax.random.split(key, 3)
            fan_in = cin * K
            bound = 1.0 / float(fan_in) ** 0.5
            w = jax.random.uniform(wk, (d_model, cin, K), jnp.float32, -bound, bound)
            b = jax.random.uniform(bk, (d_model,), jnp.float32, -bound, bound)
            self.params.append((w, b))

            b_pad = jnp.zeros((1, self.cpad), jnp.float32).at[0, :d_model].set(b)
            w_kco = jnp.transpose(w, (2, 1, 0))      # (K, Cin, Cout)
            if i == 0 and self.layer0_im2col:
                wf = w_kco.reshape(K * cin, d_model)     # row = k*Cin + c
                w_pad = (jnp.zeros((self.cin0_pad, self.cpad), jnp.float32)
                         .at[:K * cin, :d_model].set(wf))
            else:
                cin_p = self.cin0_pad if i == 0 else self.cpad
                w_pad = (jnp.zeros((K, cin_p, self.cpad), jnp.float32)
                         .at[:, :cin, :d_model].set(w_kco)
                         .reshape(K * cin_p, self.cpad))
            self.kparams.append((w_pad.astype(jnp.bfloat16), b_pad))

    def __call__(self, x_ncl):
        # x_ncl: (B, C, L) like PyTorch Conv1d input.
        B, C, L = x_ncl.shape
        K = self.window_size
        pad_l = (K - 1) // 2
        pad_r = K - 1 - pad_l                 # PyTorch 'same': extra pad on the right
        halo = max(16, _round_up(K - 1, 16))  # bf16 sublane-pack aligned halo
        tl = min(_round_up(self.tl_target, halo), _round_up(L, halo))
        lt = _round_up(L, tl)
        vmem_limit = _vmem_limit_bytes()
        n = len(self.kparams)

        def out_dt(i):
            return jnp.float32 if i == n - 1 else jnp.bfloat16

        x = jnp.transpose(x_ncl, (0, 2, 1)).astype(jnp.bfloat16)   # (B, L, C)
        x = jnp.pad(x, ((0, 0), (0, lt - L), (0, 0)))              # one-time pad

        w0, b0 = self.kparams[0]
        if self.layer0_im2col:
            # Lane-dense layer-0 im2col patches (B, lt, K*C), padded to cin0_pad.
            xp = jnp.pad(x, ((0, 0), (pad_l, pad_r), (0, 0)))
            pat = jnp.concatenate([xp[:, k:k + lt, :] for k in range(K)], axis=-1)
            pat = jnp.pad(pat, ((0, 0), (0, 0), (0, self.cin0_pad - K * C)))
            y = pointwise_pallas(pat, w0, b0, L=L, TL=tl, apply_relu=(n > 1),
                                 out_dtype=out_dt(0), vmem_limit=vmem_limit)
        else:
            x0 = jnp.pad(x, ((0, 0), (0, 0), (0, self.cin0_pad - C)))
            y = conv1d_same_pallas(x0, w0, b0, K=K, L=L, TL=tl, HALO=halo,
                                   apply_relu=(n > 1), out_dtype=out_dt(0),
                                   vmem_limit=vmem_limit)

        for i in range(1, n):
            w_flat, b2 = self.kparams[i]
            y = conv1d_same_pallas(y, w_flat, b2, K=K, L=L, TL=tl, HALO=halo,
                                   apply_relu=(i < n - 1), out_dtype=out_dt(i),
                                   vmem_limit=vmem_limit)

        # TODO(synk): `x.detach().requires_grad_(True)` is PyTorch autograd
        # bookkeeping with no JAX/Pallas equivalent; it is a no-op on values.
        y = y[:, :L, :self.d_model].astype(x_ncl.dtype)
        return jnp.transpose(y, (0, 2, 1))                          # (B, C, L)


def _reference_forward(model, x_ncl):
    """Pure-JAX f32 reference (lax conv) for correctness check."""
    x = x_ncl
    n = len(model.params)
    for i, (w, b) in enumerate(model.params):
        y = lax.conv_general_dilated(
            x, w, window_strides=(1,), padding="SAME",
            dimension_numbers=("NCH", "OIH", "NCH"))
        y = y + b[None, :, None]
        if i < n - 1:
            y = jnp.maximum(y, 0.0)
        x = y
    return x


if __name__ == "__main__":
    key = jax.random.PRNGKey(0)
    kx1, kx2, kp = jax.random.split(key, 3)

    # Config 1: batch=2, d_input=4, seq=16, d_model=32, 3 layers, window=5
    # (single L-tile, n_t == 1).
    B, d_input, L = 2, 4, 16
    d_model, n_layers, window = 32, 3, 5
    x1 = jax.random.normal(kx1, (B, d_input, L), jnp.float32)
    m1 = ECGEmbeddingsPallas(d_input, d_model, n_conv_layers=n_layers,
                             window_size=window, key=kp)
    out1 = jax.block_until_ready(m1(x1))
    ref1 = _reference_forward(m1, x1)
    assert out1.shape == (B, d_model, L), out1.shape
    # Kernel computes in bf16 with f32 accumulation; reference is pure f32.
    assert jnp.allclose(out1, ref1, rtol=3e-2, atol=3e-2), \
        float(jnp.max(jnp.abs(out1 - ref1)))

    # Config 2: multiple L-tiles (exercises halo streams + right-edge masking).
    L2 = 80
    x2 = jax.random.normal(kx2, (B, d_input, L2), jnp.float32)
    m2 = ECGEmbeddingsPallas(d_input, d_model, n_conv_layers=n_layers,
                             window_size=window, key=kp, tl_target=32)
    out2 = jax.block_until_ready(m2(x2))
    ref2 = _reference_forward(m2, x2)
    assert out2.shape == (B, d_model, L2), out2.shape
    assert jnp.allclose(out2, ref2, rtol=3e-2, atol=3e-2), \
        float(jnp.max(jnp.abs(out2 - ref2)))

    print("KERNEL_OK")
</pallas_src>

<mosaic_0001>
module attributes {stable_mosaic.version = 11 : i64} {
  func.func @_pointwise_kernel(%arg0: i32, %arg1: i32, %arg2: memref<1x16x128xbf16, #tpu.memory_space<vmem>>, %arg3: memref<128x128xbf16, #tpu.memory_space<vmem>>, %arg4: memref<1x128xf32, #tpu.memory_space<vmem>>, %arg5: memref<1x16x128xbf16, #tpu.memory_space<vmem>>) attributes {dimension_semantics = [#tpu.dimension_semantics<parallel>, #tpu.dimension_semantics<parallel>], iteration_bounds = array<i64: 2, 1>, scalar_prefetch = 0 : i64, scratch_operands = 0 : i64, tpu.core_type = #tpu.core_type<tc>, window_params = [{transform_indices = @transform_0, window_bounds = array<i64: 1, 16, 128>}, {pipeline_mode = #tpu.pipeline_mode<synchronous>, transform_indices = @transform_1, window_bounds = array<i64: 128, 128>}, {pipeline_mode = #tpu.pipeline_mode<synchronous>, transform_indices = @transform_2, window_bounds = array<i64: 1, 128>}, {transform_indices = @transform_3, window_bounds = array<i64: 1, 16, 128>}]} {
    %c0 = arith.constant 0 : index
    %c0_0 = arith.constant 0 : index
    %0 = vector.load %arg4[%c0, %c0_0] : memref<1x128xf32, #tpu.memory_space<vmem>>, vector<1x128xf32>
    %c0_1 = arith.constant 0 : index
    %c0_2 = arith.constant 0 : index
    %c0_3 = arith.constant 0 : index
    %1 = vector.load %arg2[%c0_1, %c0_2, %c0_3] : memref<1x16x128xbf16, #tpu.memory_space<vmem>>, vector<1x16x128xbf16>
    %2 = vector.shape_cast %1 : vector<1x16x128xbf16> to vector<16x128xbf16>
    %c0_4 = arith.constant 0 : index
    %c0_5 = arith.constant 0 : index
    %3 = vector.load %arg3[%c0_4, %c0_5] : memref<128x128xbf16, #tpu.memory_space<vmem>>, vector<128x128xbf16>
    %cst = arith.constant dense<0.000000e+00> : vector<16x128xf32>
    %4 = tpu.matmul %2, %3, %cst {dimension_numbers = #tpu.dot_dimension_numbers<[1], [0], [0], [1], [0, 0, 1, 1], [], []>} : vector<16x128xbf16>, vector<128x128xbf16>, vector<16x128xf32> -> vector<16x128xf32>
    %5 = vector.broadcast %0 : vector<1x128xf32> to vector<16x128xf32>
    %6 = arith.addf %4, %5 : vector<16x128xf32>
    %cst_6 = arith.constant 0.000000e+00 : f32
    %7 = vector.broadcast %cst_6 : f32 to vector<16x128xf32>
    %8 = arith.maximumf %6, %7 : vector<16x128xf32>
    %c16_i32 = arith.constant 16 : i32
    %9 = arith.muli %arg1, %c16_i32 : i32
    %c0_i32 = arith.constant 0 : i32
    %10 = arith.addi %9, %c0_i32 : i32
    %11 = tpu.iota {dimensions = array<i32: 0>} : vector<16x1xi32>
    %12 = vector.broadcast %10 : i32 to vector<16x1xi32>
    %13 = arith.addi %12, %11 : vector<16x1xi32>
    %c16_i32_7 = arith.constant 16 : i32
    %14 = vector.broadcast %c16_i32_7 : i32 to vector<16x1xi32>
    %15 = arith.cmpi slt, %13, %14 : vector<16x1xi32>
    %cst_8 = arith.constant 0.000000e+00 : f32
    %16 = vector.shape_cast %15 : vector<16x1xi1> to vector<16x1xi1>
    %17 = vector.broadcast %16 : vector<16x1xi1> to vector<16x128xi1>
    %18 = vector.broadcast %cst_8 : f32 to vector<16x128xf32>
    %19 = arith.select %17, %8, %18 : vector<16x128xi1>, vector<16x128xf32>
    %20 = arith.truncf %19 : vector<16x128xf32> to vector<16x128xbf16>
    %c0_9 = arith.constant 0 : index
    %c0_10 = arith.constant 0 : index
    %c0_11 = arith.constant 0 : index
    %21 = vector.load %arg5[%c0_9, %c0_10, %c0_11] : memref<1x16x128xbf16, #tpu.memory_space<vmem>>, vector<1x16x128xbf16>
    %22 = vector.shape_cast %21 : vector<1x16x128xbf16> to vector<16x128xbf16>
    %23 = vector.shape_cast %20 : vector<16x128xbf16> to vector<1x16x128xbf16>
    tpu.vector_store %arg5[%c0_9, %c0_10, %c0_11], %23 {strides = array<i32>} : memref<1x16x128xbf16, #tpu.memory_space<vmem>>, vector<1x16x128xbf16>,
    return
  }
  func.func @transform_0(%arg0: i32, %arg1: i32) -> (i32, i32, i32) {
    %c0_i32 = arith.constant 0 : i32
    %c0_i32_0 = arith.constant 0 : i32
    return %arg0, %arg1, %c0_i32 : i32, i32, i32
  }
  func.func @transform_1(%arg0: i32, %arg1: i32) -> (i32, i32) {
    %c0_i32 = arith.constant 0 : i32
    %c0_i32_0 = arith.constant 0 : i32
    %c0_i32_1 = arith.constant 0 : i32
    return %c0_i32, %c0_i32_0 : i32, i32
  }
  func.func @transform_2(%arg0: i32, %arg1: i32) -> (i32, i32) {
    %c0_i32 = arith.constant 0 : i32
    %c0_i32_0 = arith.constant 0 : i32
    %c0_i32_1 = arith.constant 0 : i32
    return %c0_i32, %c0_i32_0 : i32, i32
  }
  func.func @transform_3(%arg0: i32, %arg1: i32) -> (i32, i32, i32) {
    %c0_i32 = arith.constant 0 : i32
    %c0_i32_0 = arith.constant 0 : i32
    return %arg0, %arg1, %c0_i32 : i32, i32, i32
  }
}

</mosaic_0001>

<llo_original>
// kernel: tpu_custom_call.1
$region0: #{tpu_custom_call.1}
  #allocation0 [shape = 'u32[]', space=smem, size = 0x4, offset = 0x4, fixed_abs, tag = 'smem constant byte address 0x4 - core index']
  #allocation1 [shape = 'u32[72,128]{1,0:T(1,128)}', space=vmem, size = 0x9000, scoped, tag = 'internal scratch']
  %s0 = inlined_call_operand.hbm [shape: bf16[2,16,128], index: 0, kind: input, shape index: {}]
  %s1 = inlined_call_operand.hbm [shape: bf16[128,128], index: 1, kind: input, shape index: {}]
  %s2 = inlined_call_operand.vmem [shape: f32[1,128], index: 2, kind: input, shape index: {}]
  %s3 = inlined_call_operand.hbm [shape: bf16[2,16,128], index: 3, kind: output, shape index: {}]
  %s4 = sld [smem:[#allocation0]]
  $region53: #{tpu_custom_call.1} parent=0
    _
  %s6 = ssub.s32 1, %s4
  %s7 = scalar_select 0, %s6, %s4
  $region1: #{tpu_custom_call.1} parent=0
    #allocation2 [shape = 'u8[8192]{0}', space=vmem, size = 0x2000, scoped, tag = 'input window, operand 0']
    #allocation3 [shape = 's32[2]{0}', space=sflag, size = 0x8, scoped, tag = 'scoped memory for tpu_custom_call.1']
    #allocation4 [shape = 's32[2]{0}', space=sflag, size = 0x8, scoped, tag = 'scoped memory for tpu_custom_call.1']
    #allocation5 [shape = 'u8[32768]{0}', space=vmem, size = 0x8000, scoped, tag = 'input window, operand 1, single buffered']
    #allocation6 [shape = 's32[1]{0}', space=sflag, size = 0x4, scoped, tag = 'scoped memory for tpu_custom_call.1']
    #allocation7 [shape = 'u8[8192]{0}', space=vmem, size = 0x2000, scoped, tag = 'output window, operand 0']
    %8 = vsyncpa [#allocation3], 0
    %s9 = scalar_lea.sflag [#allocation3], 1
    %10 = vsyncpa %s9, 0
    %11 = vsyncpa [#allocation6], 0
    %12 = vsyncpa [#allocation4], 0
    %s13 = scalar_lea.sflag [#allocation4], 1
    %14 = vsyncpa %s13, 0
    loop: start=0, step=1, limit=4
    $region2: #{tpu_custom_call.1} parent=1 // loop_pre_header
      _
    $region3: #{tpu_custom_call.1} parent=1 // loop_header
      %s16 = sphi 0, %s20
      %p17 = scmp.ge.s32.totalorder %s16, 4
      %s23 = sphi 0, %s35
      %s24 = sphi 0, %s31
      %s25 = sphi 0, %s23
      %s26 = sphi 0, %s24
      %s27 = sphi 0, %s25
      %s28 = sphi 0, %s26
      %s40 = sphi 0, %s42
      %s43 = sphi 0, %s40
      %s44 = sphi 0, %s43
      %s60 = sphi 0, %s44
      %s64 = sphi 0, %s64
      %s66 = sphi 0, %s64
      %s67 = sphi 0, %s66
      %s81 = sphi 0, %s67
      %s85 = sphi 0, %s85
      %s87 = sphi 0, %s85
      %s88 = sphi 0, %s87
      %s102 = sphi 0, %s88
      %s110 = sphi 0, %s112
      %s113 = sphi 0, %s110
      %s114 = sphi 0, %s113
      %s130 = sphi 0, %s114
    $region4: #{tpu_custom_call.1} parent=1 // loop_header_branch
      %19 = sbr.rel (%p17) target = $region8
    $region5: #{tpu_custom_call.1} parent=1 // loop_body
      %s21 = ssub.s32 %s16, 1
      %s22 = ssub.s32 %s16, 2
      %s29 = sadd.s32 1, %s24
      %p30 = scmp.ge.s32.totalorder %s29, 1
      %s31 = scalar_select %p30, 0, %s29
      %s32 = sadd.s32 1, %s23
      %s33 = scalar_select %p30, %s32, %s23
      %p34 = scmp.ge.s32.totalorder %s33, 2
      %s35 = scalar_select %p34, 0, %s33
      %s36 = ssub.s32 %s23, %s35
      %s37 = ssub.s32 %s24, %s31
      %s38 = sor.u32 %s36, %s37
      %p39 = scmp.eq.s32.totalorder %s38, 0
      %s41 = sadd.s32 %s40, 1
      %s42 = scalar_select %p39, %s40, %s41
      %p45 = pneg %p39
      %p46 = scmp.eq.s32.totalorder %s16, 1
      %p47 = por %p45, %p46
      %p48 = scmp.ne.s32.totalorder %s40, %s43
      %p49 = scmp.eq.s32.totalorder %s16, 0
      %p50 = por %p48, %p49
      %p51 = scmp.ne.s32.totalorder %s40, %s43
      %p52 = scmp.eq.s32.totalorder %s21, 1
      %p53 = por %p51, %p52
      %p54 = scmp.ne.s32.totalorder %s43, %s44
      %p55 = scmp.eq.s32.totalorder %s21, 0
      %p56 = por %p54, %p55
      %p57 = scmp.ne.s32.totalorder %s43, %s44
      %p58 = scmp.eq.s32.totalorder %s22, 1
      %p59 = por %p57, %p58
      %p61 = scmp.ne.s32.totalorder %s44, %s60
      %p62 = scmp.eq.s32.totalorder %s22, 0
      %p63 = por %p61, %p62
      %s65 = sadd.s32 %s64, 1
      %p68 = scmp.eq.s32.totalorder %s16, 1
      %p69 = scmp.ne.s32.totalorder %s64, %s66
      %p70 = scmp.eq.s32.totalorder %s16, 0
      %p71 = por %p69, %p70
      %p72 = scmp.ne.s32.totalorder %s64, %s66
      %p73 = scmp.eq.s32.totalorder %s21, 1
      %p74 = por %p72, %p73
      %p75 = scmp.ne.s32.totalorder %s66, %s67
      %p76 = scmp.eq.s32.totalorder %s21, 0
      %p77 = por %p75, %p76
      %p78 = scmp.ne.s32.totalorder %s66, %s67
      %p79 = scmp.eq.s32.totalorder %s22, 1
      %p80 = por %p78, %p79
      %p82 = scmp.ne.s32.totalorder %s67, %s81
      %p83 = scmp.eq.s32.totalorder %s22, 0
      %p84 = por %p82, %p83
      %s86 = sadd.s32 %s85, 1
      %p89 = scmp.eq.s32.totalorder %s16, 1
      %p90 = scmp.ne.s32.totalorder %s85, %s87
      %p91 = scmp.eq.s32.totalorder %s16, 0
      %p92 = por %p90, %p91
      %p93 = scmp.ne.s32.totalorder %s85, %s87
      %p94 = scmp.eq.s32.totalorder %s21, 1
      %p95 = por %p93, %p94
      %p96 = scmp.ne.s32.totalorder %s87, %s88
      %p97 = scmp.eq.s32.totalorder %s21, 0
      %p98 = por %p96, %p97
      %p99 = scmp.ne.s32.totalorder %s87, %s88
      %p100 = scmp.eq.s32.totalorder %s22, 1
      %p101 = por %p99, %p100
      %p103 = scmp.ne.s32.totalorder %s88, %s102
      %p104 = scmp.eq.s32.totalorder %s22, 0
      %p105 = por %p103, %p104
      %s106 = ssub.s32 %s23, %s35
      %s107 = ssub.s32 %s24, %s31
      %s108 = sor.u32 %s106, %s107
      %p109 = scmp.eq.s32.totalorder %s108, 0
      %s111 = sadd.s32 %s110, 1
      %s112 = scalar_select %p109, %s110, %s111
      %p115 = pneg %p109
      %p116 = scmp.eq.s32.totalorder %s16, 1
      %p117 = por %p115, %p116
      %p118 = scmp.ne.s32.totalorder %s110, %s113
      %p119 = scmp.eq.s32.totalorder %s16, 0
      %p120 = por %p118, %p119
      %p121 = scmp.ne.s32.totalorder %s110, %s113
      %p122 = scmp.eq.s32.totalorder %s21, 1
      %p123 = por %p121, %p122
      %p124 = scmp.ne.s32.totalorder %s113, %s114
      %p125 = scmp.eq.s32.totalorder %s21, 0
      %p126 = por %p124, %p125
      %p127 = scmp.ne.s32.totalorder %s113, %s114
      %p128 = scmp.eq.s32.totalorder %s22, 1
      %p129 = por %p127, %p128
      %p131 = scmp.ne.s32.totalorder %s114, %s130
      %p132 = scmp.eq.s32.totalorder %s22, 0
      %p133 = por %p131, %p132
      %p134 = scmp.le.s32.totalorder 1, %s16
      %p135 = scmp.lt.s32.totalorder %s16, 3
      %p136 = pnand %p134, %p135
      %p137 = pneg %p136
      // Predicated region
      $region9: #{tpu_custom_call.1} parent=5 // pred_check
        _
      $region10: #{tpu_custom_call.1} parent=5 // pred_check_branch
        %139 = sbr.rel (%p136) target = $region12
      $region11: #{tpu_custom_call.1} parent=5 // pred_region
        %s140 = ssub.s32 %s16, 1
        // Predicated region
        $region13: #{tpu_custom_call.1} parent=11 // pred_check
          %p141 = pneg %p77
        $region14: #{tpu_custom_call.1} parent=11 // pred_check_branch
          %143 = sbr.rel (%p141) target = $region16
        $region15: #{tpu_custom_call.1} parent=11 // pred_region
          %145 = vsyncadd [#allocation6], 0
          %s146 = sshll.u32 %s1, 4
          %s147 = int_to_ptr.hbm [resolvable:$true] %s146
          %s148 = sshll.u32 [#allocation5], 4
          %s149 = int_to_ptr.vmem [resolvable:$true] %s148
          %154 = dma.hbm_to_vmem [thread:$0]  %s147, 1024, %s149, [#allocation6], 64, 64, 4
        $region16: #{tpu_custom_call.1} parent=11 // pred_fallthru
          _
        // Predicated region
        $region17: #{tpu_custom_call.1} parent=11 // pred_check
          %p155 = pneg %p98
        $region18: #{tpu_custom_call.1} parent=11 // pred_check_branch
          %157 = sbr.rel (%p155) target = $region20
        $region19: #{tpu_custom_call.1} parent=11 // pred_region
          _
        $region20: #{tpu_custom_call.1} parent=11 // pred_fallthru
          _
      $region12: #{tpu_custom_call.1} parent=5 // pred_fallthru
        _
      %p158 = scmp.lt.s32.totalorder %s16, 2
      // Predicated region
      $region21: #{tpu_custom_call.1} parent=5 // pred_check
        %p159 = pneg %p158
      $region22: #{tpu_custom_call.1} parent=5 // pred_check_branch
        %161 = sbr.rel (%p159) target = $region24
      $region23: #{tpu_custom_call.1} parent=5 // pred_region
        // Predicated region
        $region25: #{tpu_custom_call.1} parent=23 // pred_check
          %p162 = pneg %p50
        $region26: #{tpu_custom_call.1} parent=23 // pred_check_branch
          %164 = sbr.rel (%p162) target = $region28
        $region27: #{tpu_custom_call.1} parent=23 // pred_region
          %s165 = sand.u32 %s40, 1
          %s166 = scalar_lea.sflag [#allocation3], %s165
          %s167 = sand.u32 %s40, 1
          %s168 = smul.addr %s167, 8
          %s169 = scalar_lea.vmem [#allocation2], %s168
          %s170 = smul.u32 2, %s24
          %172 = vsyncadd %s166, 0
          %s173 = smul.addr %s23, 2
          %s174 = sadd.s32 %s170, %s173
          %s175 = smul.addr %s174, 4
          %s176 = scalar_lea.hbm %s0, %s175
          %s177 = sshll.u32 %s176, 4
          %s178 = int_to_ptr.hbm [resolvable:$true] %s177
          %s179 = sshll.u32 %s169, 4
          %s180 = int_to_ptr.vmem [resolvable:$true] %s179
          %185 = dma.hbm_to_vmem [thread:$0]  %s178, 128, %s180, %s166, 64, 64, 4
        $region28: #{tpu_custom_call.1} parent=23 // pred_fallthru
          _
      $region24: #{tpu_custom_call.1} parent=5 // pred_fallthru
        _
      %p186 = scmp.le.s32.totalorder 1, %s16
      %p187 = scmp.lt.s32.totalorder %s16, 3
      %p188 = pnand %p186, %p187
      %p189 = pneg %p188
      // Predicated region
      $region29: #{tpu_custom_call.1} parent=5 // pred_check
        _
      $region30: #{tpu_custom_call.1} parent=5 // pred_check_branch
        %191 = sbr.rel (%p188) target = $region32
      $region31: #{tpu_custom_call.1} parent=5 // pred_region
        %s192 = ssub.s32 %s16, 1
        %s193 = sand.u32 %s43, 1
        %s194 = scalar_lea.sflag [#allocation3], %s193
        %s195 = sand.u32 %s43, 1
        %s196 = smul.addr %s195, 8
        %s197 = scalar_lea.vmem [#allocation2], %s196
        // Predicated region
        $region33: #{tpu_custom_call.1} parent=31 // pred_check
          %p198 = pneg %p56
        $region34: #{tpu_custom_call.1} parent=31 // pred_check_branch
          %200 = sbr.rel (%p198) target = $region36
        $region35: #{tpu_custom_call.1} parent=31 // pred_region
          %202 = dma.done %s194, 128
        $region36: #{tpu_custom_call.1} parent=31 // pred_fallthru
          _
        // Predicated region
        $region37: #{tpu_custom_call.1} parent=31 // pred_check
          %p203 = pneg %p77
        $region38: #{tpu_custom_call.1} parent=31 // pred_check_branch
          %205 = sbr.rel (%p203) target = $region40
        $region39: #{tpu_custom_call.1} parent=31 // pred_region
          %207 = dma.done [#allocation6], 1024
        $region40: #{tpu_custom_call.1} parent=31 // pred_fallthru
          _
        %s208 = sand.u32 %s43, 1
        %s209 = scalar_lea.sflag [#allocation3], %s208
        %s210 = sand.u32 %s43, 1
        %s211 = smul.addr %s210, 8
        %s212 = scalar_lea.vmem [#allocation2], %s211
        %p213 = pneg %p56
        %p214 = pneg %p53
        %p215 = pneg %p77
        %p216 = pneg %p74
        %p217 = pneg %p98
        %p218 = pneg %p95
        %p219 = pneg %p126
        %p220 = pneg %p123
        %s221 = sand.u32 %s113, 1
        %s222 = scalar_lea.sflag [#allocation4], %s221
        %s223 = sand.u32 %s113, 1
        %s224 = smul.addr %s223, 8
        %s225 = scalar_lea.vmem [#allocation7], %s224
        %s226 = smul.u32 2, %s26
        %s227 = smul.u32 2, %s26
        %v228 = vld [vmem:[%s2] sm:$0x1]
        %v229 = vld [vmem:[%s197] sm:$0xf]
        %v230 = vld [vmem:[%s197 + $0x4] sm:$0xf]
        %v231 = vld [vmem:[#allocation5] sm:$0xf]
        %v232 = vld [vmem:[#allocation5 + $0x4] sm:$0xf]
        %v233 = vld [vmem:[#allocation5 + $0x8] sm:$0xf]
        %v234 = vld [vmem:[#allocation5 + $0xc] sm:$0xf]
        %v235 = vld [vmem:[#allocation5 + $0x10] sm:$0xf]
        %v236 = vld [vmem:[#allocation5 + $0x14] sm:$0xf]
        %v237 = vld [vmem:[#allocation5 + $0x18] sm:$0xf]
        %v238 = vld [vmem:[#allocation5 + $0x1c] sm:$0xf]
        %v239 = vld [vmem:[#allocation5 + $0x20] sm:$0xf]
        %v240 = vld [vmem:[#allocation5 + $0x24] sm:$0xf]
        %v241 = vld [vmem:[#allocation5 + $0x28] sm:$0xf]
        %v242 = vld [vmem:[#allocation5 + $0x2c] sm:$0xf]
        %v243 = vld [vmem:[#allocation5 + $0x30] sm:$0xf]
        %v244 = vld [vmem:[#allocation5 + $0x34] sm:$0xf]
        %v245 = vld [vmem:[#allocation5 + $0x38] sm:$0xf]
        %v246 = vld [vmem:[#allocation5 + $0x3c] sm:$0xf]
        %v248 = vperm.slane %v228, 0
        %v252 = vunpack.c.l.b16 %v229
        %v253 = vunpack.c.l.b16 %v230
        %v254 = vpack.c.b16 %v253, %v252
        %v272 = vunpack.c.l.b16 %v231
        %v273 = vunpack.c.l.b16 %v232
        %v274 = vunpack.c.l.b16 %v233
        %v275 = vunpack.c.l.b16 %v234
        %v276 = vunpack.c.l.b16 %v235
        %v277 = vunpack.c.l.b16 %v236
        %v278 = vunpack.c.l.b16 %v237
        %v279 = vunpack.c.l.b16 %v238
        %v280 = vunpack.c.l.b16 %v239
        %v281 = vunpack.c.l.b16 %v240
        %v282 = vunpack.c.l.b16 %v241
        %v283 = vunpack.c.l.b16 %v242
        %v284 = vunpack.c.l.b16 %v243
        %v285 = vunpack.c.l.b16 %v244
        %v286 = vunpack.c.l.b16 %v245
        %v287 = vunpack.c.l.b16 %v246
        %v288 = vpack.c.b16 %v273, %v272
        %v289 = vpack.c.b16 %v275, %v274
        %v290 = vpack.c.b16 %v277, %v276
        %v291 = vpack.c.b16 %v279, %v278
        %v292 = vpack.c.b16 %v281, %v280
        %v293 = vpack.c.b16 %v283, %v282
        %v294 = vpack.c.b16 %v285, %v284
        %v295 = vpack.c.b16 %v287, %v286
        %304 = vmatpush.bf16.msra.mxu0 %v295
        %305 = vmatpush.bf16.msra.mxu0 %v294
        %306 = vmatpush.bf16.msra.mxu0 %v293
        %307 = vmatpush.bf16.msra.mxu0 %v292
        %308 = vmatpush.bf16.msra.mxu0 %v291
        %309 = vmatpush.bf16.msra.mxu0 %v290
        %310 = vmatpush.bf16.msra.mxu0 %v289
        %311 = vmatpush.bf16.msra.mxu0 %v288
        %312 = vmatmul.bf16.gmra.mxu0 %v254
        %v313 = vpop.f32.mrf.mxu0
        %v314 = vadd.f32 %v248, %v313
        %v315 = vpop.f32.mrf.mxu0
        %v316 = vadd.f32 %v248, %v315
        %317 = vdwg.mxu0
        %v318 = vmax.f32 %v314, 0.0
        %v319 = vmax.f32 %v316, 0.0
        %s320 = smul.u32 %s26, 16
        %v321 = vlaneseq
        %v322 = vshrl.u32 %v321, 7
        %v323 = vadd.s32 %v322, 8
        %v324 = vstv %s320
        %v325 = vadd.s32 %v324, %v322
        %v326 = vadd.s32 %v324, %v323
        %vm327 = vcmp.lt.s32.totalorder %v325, 16
        %vm328 = vcmp.lt.s32.totalorder %v326, 16
        %v329 = vsel %vm327, 1, 0
        %v330 = vsel %vm328, 1, 0
        %vm331 = vcmp.eq.s32.totalorder %v329, 1
        %vm332 = vcmp.eq.s32.totalorder %v330, 1
        %v333 = vsel %vm331, %v318, 0.0
        %v334 = vsel %vm332, %v319, 0.0
        %v335 = vpack.c.bf16 %v333, %v333
        %v336 = vpack.c.bf16 %v334, %v334
        %337 = vst [vmem:[%s225] sm:$0xf] %v335
        %338 = vst [vmem:[%s225 + $0x4] sm:$0xf] %v336
        %s339 = sand.u32 %s113, 1
        %s340 = scalar_lea.sflag [#allocation4], %s339
        %s341 = sand.u32 %s113, 1
        %s342 = smul.addr %s341, 8
        %s343 = scalar_lea.vmem [#allocation7], %s342
        // Predicated region
        $region41: #{tpu_custom_call.1} parent=31 // pred_check
          %p344 = pneg %p123
        $region42: #{tpu_custom_call.1} parent=31 // pred_check_branch
          %346 = sbr.rel (%p344) target = $region44
        $region43: #{tpu_custom_call.1} parent=31 // pred_region
          %s347 = smul.u32 2, %s26
          %349 = vsyncadd %s340, 0
          %s350 = smul.addr %s25, 2
          %s351 = sadd.s32 %s347, %s350
          %s352 = smul.addr %s351, 4
          %s353 = scalar_lea.hbm %s3, %s352
          %s354 = sshll.u32 %s343, 4
          %s355 = int_to_ptr.vmem [resolvable:$true] %s354
          %s356 = sshll.u32 %s353, 4
          %s357 = int_to_ptr.hbm [resolvable:$true] %s356
          %362 = dma.vmem_to_hbm [thread:$0]  %s355, 128, %s357, %s340, 64, 64, 4
        $region44: #{tpu_custom_call.1} parent=31 // pred_fallthru
          _
      $region32: #{tpu_custom_call.1} parent=5 // pred_fallthru
        _
      %p363 = scmp.le.s32.totalorder 2, %s16
      // Predicated region
      $region45: #{tpu_custom_call.1} parent=5 // pred_check
        %p364 = pneg %p363
      $region46: #{tpu_custom_call.1} parent=5 // pred_check_branch
        %366 = sbr.rel (%p364) target = $region48
      $region47: #{tpu_custom_call.1} parent=5 // pred_region
        %s367 = ssub.s32 %s16, 2
        // Predicated region
        $region49: #{tpu_custom_call.1} parent=47 // pred_check
          %p368 = pneg %p129
        $region50: #{tpu_custom_call.1} parent=47 // pred_check_branch
          %370 = sbr.rel (%p368) target = $region52
        $region51: #{tpu_custom_call.1} parent=47 // pred_region
          %s371 = sand.u32 %s114, 1
          %s372 = scalar_lea.sflag [#allocation4], %s371
          %s373 = sand.u32 %s114, 1
          %s374 = smul.addr %s373, 8
          %s375 = scalar_lea.vmem [#allocation7], %s374
          %377 = dma.done %s372, 128
        $region52: #{tpu_custom_call.1} parent=47 // pred_fallthru
          _
      $region48: #{tpu_custom_call.1} parent=5 // pred_fallthru
        _
    $region6: #{tpu_custom_call.1} parent=1 // loop_footer
      %s20 = sadd.s32 1, %s16
    $region7: #{tpu_custom_call.1} parent=1 // loop_footer_branch
      %15 = sbr.rel target = $region3
    $region8: #{tpu_custom_call.1} parent=1 // loop_exit
      _
    %378 = vsyncpa [#allocation3], 1
    %s379 = scalar_lea.sflag [#allocation3], 1
    %380 = vsyncpa %s379, 1
    %381 = vsyncpa [#allocation6], 1
    %382 = vsyncpa [#allocation4], 1
    %s383 = scalar_lea.sflag [#allocation4], 1
    %384 = vsyncpa %s383, 1

</llo_original>
